<compile_context>
chip_gen: v7x
topology: tpu7x:2x2x1
jax: 0.10.0
libtpu: 0.0.40
codegen_flags: <defaults>
</compile_context>

<pallas_src>
import functools

import jax
import jax.numpy as jnp
from jax.experimental import pallas as pl
from jax.experimental.pallas import tpu as pltpu


_TARGET_TILE_BYTES = 4 * 1024 * 1024   # cap per input block (lane-padded accounting)
_MIN_TILE_BYTES = 1 * 1024 * 1024      # ~1 MiB tiles already reach ~85% of HBM BW
_TARGET_ROW_STEPS = 8                  # >= 2 TensorCores x 4 pipelined steps on v7x


def _cdiv(a, b):
    return -(-a // b)


def _round_up(x, m):
    return _cdiv(x, m) * m


def _choose_tiling(rows, length, itemsize):
    """Pick (tile_r, chunk_len, num_chunks) using lane/sublane-padded VMEM sizes."""
    sublane = max(8, 32 // itemsize)       # native sublane packing: f32->8, bf16->16, int8->32
    lane_len = _round_up(length, 128)      # lane-padded row length as laid out in VMEM

    # Chunk H*W when even a one-sublane-group-tall tile would exceed the budget.
    # Chunks (other than a single full-extent block) must be multiples of 128 lanes.
    max_chunk = max(128, (_TARGET_TILE_BYTES // (sublane * itemsize)) // 128 * 128)
    if lane_len > max_chunk:
        chunk_len = max_chunk
        num_chunks = _cdiv(length, chunk_len)
    else:
        chunk_len = length                 # full H*W extent in one block
        num_chunks = 1

    chunk_row_bytes = _round_up(chunk_len, 128) * itemsize

    # Row tile: aim for >= _TARGET_ROW_STEPS steps on the "parallel" row axis,
    # with a ~1 MiB per-block floor and a ~4 MiB cap.
    max_rows = max(sublane, (_TARGET_TILE_BYTES // chunk_row_bytes) // sublane * sublane)
    min_rows = max(sublane, (_MIN_TILE_BYTES // chunk_row_bytes) // sublane * sublane)
    want_rows = max(sublane, _round_up(_cdiv(rows, _TARGET_ROW_STEPS), sublane))
    tile_r = min(max_rows, max(min_rows, want_rows))
    tile_r = min(tile_r, _round_up(rows, sublane))

    # Prefer an even number of row steps so v7x's two TensorCores stay balanced.
    n_steps = _cdiv(rows, tile_r)
    if n_steps > 1 and n_steps % 2 == 1:
        cand = max(sublane, _round_up(_cdiv(rows, n_steps + 1), sublane))
        if _cdiv(rows, cand) % 2 == 0:
            tile_r = cand

    return tile_r, chunk_len, num_chunks


def _gap_kernel(x_ref, o_ref, acc_ref, *, length, chunk_len, num_chunks, inv_len):
    # Grid: (row_tiles, hw_chunks); the chunk (reduction) axis is last / "arbitrary".
    k = pl.program_id(1)

    @pl.when(k == 0)
    def _():
        acc_ref[...] = jnp.zeros_like(acc_ref)

    x = x_ref[...]
    if num_chunks > 1 and length % chunk_len != 0:
        # Mask out-of-range lanes of the ragged last H*W chunk (garbage padding).
        col = jax.lax.broadcasted_iota(jnp.int32, x.shape, 1) + k * chunk_len
        x = jnp.where(col < length, x, jnp.zeros_like(x))

    # f32 accumulation fused into the lane-axis (XLU) reduction; no full f32 tile temp.
    acc_ref[...] += jnp.sum(x, axis=-1, dtype=jnp.float32, keepdims=True)

    @pl.when(k == num_chunks - 1)
    def _():
        o_ref[...] = (acc_ref[...] * inv_len).astype(o_ref.dtype)


def global_avg_pool2d(x):
    """Pallas equivalent of F.avg_pool2d(x, kernel_size=x.shape[2:]) for NCHW input."""
    n, c, h, w = x.shape
    rows = n * c
    length = h * w
    itemsize = x.dtype.itemsize

    # Free reshape for contiguous NCHW: the reduction axis becomes the lane axis.
    x2d = x.reshape(rows, length)

    tile_r, chunk_len, num_chunks = _choose_tiling(rows, length, itemsize)
    row_steps = _cdiv(rows, tile_r)

    kernel = functools.partial(
        _gap_kernel,
        length=length,
        chunk_len=chunk_len,
        num_chunks=num_chunks,
        inv_len=1.0 / float(length),
    )

    out2d = pl.pallas_call(
        kernel,
        out_shape=jax.ShapeDtypeStruct((rows, 1), x.dtype),
        grid_spec=pltpu.PrefetchScalarGridSpec(
            num_scalar_prefetch=0,
            grid=(row_steps, num_chunks),
            in_specs=[
                # Lane-dense input tile: (tile_r rows) x (chunk of H*W lanes).
                pl.BlockSpec((tile_r, chunk_len), lambda i, k: (i, k)),
            ],
            # Output block is resident across the reduction axis; ragged last
            # row block is masked, so no padding rows ever reach HBM.
            out_specs=pl.BlockSpec((tile_r, 1), lambda i, k: (i, 0)),
            scratch_shapes=[pltpu.VMEM((tile_r, 1), jnp.float32)],
        ),
        compiler_params=pltpu.CompilerParams(
            dimension_semantics=("parallel", "arbitrary"),
            vmem_limit_bytes=32 * 1024 * 1024,
        ),
        cost_estimate=pl.CostEstimate(
            flops=rows * length,
            transcendentals=0,
            bytes_accessed=(rows * length + rows) * itemsize,
        ),
    )(x2d)

    return out2d.reshape(n, c, 1, 1)


if __name__ == "__main__":
    key = jax.random.PRNGKey(0)
    # NCHW input, small shapes: batch=2, channels=4, spatial=16x16
    x = jax.random.normal(key, (2, 4, 16, 16), dtype=jnp.float32)

    out = global_avg_pool2d(x)
    out = jax.block_until_ready(out)

    # Reference check against plain JAX mean over spatial dims.
    ref = jnp.mean(x, axis=(2, 3), keepdims=True)
    assert out.shape == (2, 4, 1, 1), out.shape
    assert jnp.allclose(out, ref, atol=1e-5, rtol=1e-5), "mismatch vs reference"

    print("KERNEL_OK")
</pallas_src>

<mosaic_0001>
module attributes {stable_mosaic.version = 11 : i64} {
  func.func @_gap_kernel(%arg0: i32, %arg1: i32, %arg2: memref<8x256xf32, #tpu.memory_space<vmem>>, %arg3: memref<8x1xf32, #tpu.memory_space<vmem>>, %arg4: memref<8x1xf32, #tpu.memory_space<vmem>>) attributes {dimension_semantics = [#tpu.dimension_semantics<parallel>, #tpu.dimension_semantics<arbitrary>], iteration_bounds = array<i64: 1, 1>, scalar_prefetch = 0 : i64, scratch_operands = 1 : i64, tpu.core_type = #tpu.core_type<tc>, window_params = [{transform_indices = @transform_0, window_bounds = array<i64: 8, 256>}, {transform_indices = @transform_1, window_bounds = array<i64: 8, 1>}]} {
    %c0_i32 = arith.constant 0 : i32
    %0 = arith.cmpi eq, %arg1, %c0_i32 : i32
    %1 = arith.extui %0 : i1 to i32
    %c0_i32_0 = arith.constant 0 : i32
    %2 = arith.cmpi ne, %1, %c0_i32_0 : i32
    scf.if %2 {
      %cst_8 = arith.constant 0.000000e+00 : f32
      %12 = vector.broadcast %cst_8 : f32 to vector<8x1xf32>
      %c0_9 = arith.constant 0 : index
      %c0_10 = arith.constant 0 : index
      %13 = vector.load %arg4[%c0_9, %c0_10] : memref<8x1xf32, #tpu.memory_space<vmem>>, vector<8x1xf32>
      tpu.vector_store %arg4[%c0_9, %c0_10], %12 {strides = array<i32>} : memref<8x1xf32, #tpu.memory_space<vmem>>, vector<8x1xf32>,
    } else {
    }
    %c0 = arith.constant 0 : index
    %c0_1 = arith.constant 0 : index
    %3 = vector.load %arg2[%c0, %c0_1] : memref<8x256xf32, #tpu.memory_space<vmem>>, vector<8x256xf32>
    %c0_2 = arith.constant 0 : index
    %c0_3 = arith.constant 0 : index
    %4 = vector.load %arg4[%c0_2, %c0_3] : memref<8x1xf32, #tpu.memory_space<vmem>>, vector<8x1xf32>
    %cst = arith.constant dense<0.000000e+00> : vector<8xf32>
    %5 = vector.multi_reduction <add>, %3, %cst [1] : vector<8x256xf32> to vector<8xf32>
    %6 = vector.shape_cast %5 : vector<8xf32> to vector<8x1xf32>
    %7 = arith.addf %4, %6 : vector<8x1xf32>
    %c0_4 = arith.constant 0 : index
    %c0_5 = arith.constant 0 : index
    %8 = vector.load %arg4[%c0_4, %c0_5] : memref<8x1xf32, #tpu.memory_space<vmem>>, vector<8x1xf32>
    tpu.vector_store %arg4[%c0_4, %c0_5], %7 {strides = array<i32>} : memref<8x1xf32, #tpu.memory_space<vmem>>, vector<8x1xf32>,
    %c0_i32_6 = arith.constant 0 : i32
    %9 = arith.cmpi eq, %arg1, %c0_i32_6 : i32
    %10 = arith.extui %9 : i1 to i32
    %c0_i32_7 = arith.constant 0 : i32
    %11 = arith.cmpi ne, %10, %c0_i32_7 : i32
    scf.if %11 {
      %c0_8 = arith.constant 0 : index
      %c0_9 = arith.constant 0 : index
      %12 = vector.load %arg4[%c0_8, %c0_9] : memref<8x1xf32, #tpu.memory_space<vmem>>, vector<8x1xf32>
      %cst_10 = arith.constant 3.906250e-03 : f32
      %13 = vector.broadcast %cst_10 : f32 to vector<8x1xf32>
      %14 = arith.mulf %12, %13 : vector<8x1xf32>
      %c0_11 = arith.constant 0 : index
      %c0_12 = arith.constant 0 : index
      %15 = vector.load %arg3[%c0_11, %c0_12] : memref<8x1xf32, #tpu.memory_space<vmem>>, vector<8x1xf32>
      tpu.vector_store %arg3[%c0_11, %c0_12], %14 {strides = array<i32>} : memref<8x1xf32, #tpu.memory_space<vmem>>, vector<8x1xf32>,
    } else {
    }
    return
  }
  func.func @transform_0(%arg0: i32, %arg1: i32) -> (i32, i32) {
    %c0_i32 = arith.constant 0 : i32
    return %arg0, %arg1 : i32, i32
  }
  func.func @transform_1(%arg0: i32, %arg1: i32) -> (i32, i32) {
    %c0_i32 = arith.constant 0 : i32
    %c0_i32_0 = arith.constant 0 : i32
    return %arg0, %c0_i32 : i32, i32
  }
}

</mosaic_0001>

<llo_original>
// kernel: tpu_custom_call.1
$region0: #{tpu_custom_call.1}
  #allocation0 [shape = 'u32[]', space=smem, size = 0x4, offset = 0x4, fixed_abs, tag = 'smem constant byte address 0x4 - core index']
  #allocation1 [shape = 'u32[144,128]{1,0:T(1,128)}', space=vmem, size = 0x12000, scoped, tag = 'internal scratch']
  #allocation2 [shape = 'f32[8,1]{1,0:T(8,128)}', space=vmem, size = 0x1000, scoped, tag = 'scratch operand']
  %s0 = inlined_call_operand.hbm [shape: f32[8,256], index: 0, kind: input, shape index: {}]
  %s1 = inlined_call_operand.vmem [shape: f32[8,1], index: 1, kind: output, shape index: {}]
  %s2 = sld [smem:[#allocation0]]
  $region26: #{tpu_custom_call.1} parent=0
    _
  %s4 = ssub.s32 1, %s2
  %s5 = scalar_select 0, %s4, %s2
  $region1: #{tpu_custom_call.1} parent=0
    #allocation3 [shape = 'u8[8192]{0}', space=vmem, size = 0x2000, scoped, tag = 'input window, operand 0, single buffered']
    #allocation4 [shape = 's32[1]{0}', space=sflag, size = 0x4, scoped, tag = 'scoped memory for tpu_custom_call.1']
    %6 = vsyncpa [#allocation4], 0
    // Predicated region
    $region2: #{tpu_custom_call.1} parent=1 // pred_check
      _
    $region3: #{tpu_custom_call.1} parent=1 // pred_check_branch
      %8 = sbr.rel (0) target = $region5
    $region4: #{tpu_custom_call.1} parent=1 // pred_region
      %s10 = ssub.s32 256, 256
      %11 = vsyncadd [#allocation4], %s10
      %s13 = sshll.u32 [#allocation3], 4
      %s14 = int_to_ptr.vmem [resolvable:$true] %s13
      %16 = dma.hbm_to_vmem [thread:$0]  %s0, 256, %s14, [#allocation4]
    $region5: #{tpu_custom_call.1} parent=1 // pred_fallthru
      _
    // Predicated region
    $region6: #{tpu_custom_call.1} parent=1 // pred_check
      _
    $region7: #{tpu_custom_call.1} parent=1 // pred_check_branch
      %18 = sbr.rel (0) target = $region9
    $region8: #{tpu_custom_call.1} parent=1 // pred_region
      %19 = dma.done [#allocation4], 256
    $region9: #{tpu_custom_call.1} parent=1 // pred_fallthru
      _
    %p20 = scmp.eq.s32.totalorder 0, 0
    // Predicated region
    $region10: #{tpu_custom_call.1} parent=1 // pred_check
      %p21 = pneg %p20
    $region11: #{tpu_custom_call.1} parent=1 // pred_check_branch
      %23 = sbr.rel (%p21) target = $region13
    $region12: #{tpu_custom_call.1} parent=1 // pred_region
      %vm24 = vcmask 7168
      %25 = vst.msk [vmem:[#allocation2] sm:$0xff] %vm24, 0.0
    $region13: #{tpu_custom_call.1} parent=1 // pred_fallthru
      _
    %v26 = vld [vmem:[#allocation3] sm:$0xff]
    %v27 = vld [vmem:[#allocation3 + $0x8] sm:$0xff]
    %v28 = vld [vmem:[#allocation2] sm:$0xff]
    %v29 = vadd.f32 %v26, %v27
    %30 = vadd.xlane.f32.xlu0 %v29
    %v31 = vpop.xlane.xlu0 %30
    %v32 = vadd.f32 %v28, %v31
    %vm33 = vcmask 7168
    %34 = vst.msk [vmem:[#allocation2] sm:$0xff] %vm33, %v32
    // Predicated region
    $region14: #{tpu_custom_call.1} parent=1 // pred_check
      %p35 = pneg %p20
    $region15: #{tpu_custom_call.1} parent=1 // pred_check_branch
      %37 = sbr.rel (%p35) target = $region17
    $region16: #{tpu_custom_call.1} parent=1 // pred_region
      %v38 = vld [vmem:[#allocation2] sm:$0xff]
      %v39 = vmul.f32 %v38, 0.00390625
      %40 = vst.msk [vmem:[%s1] sm:$0xff] %vm33, %v39
    $region17: #{tpu_custom_call.1} parent=1 // pred_fallthru
      _
    // Predicated region
    $region18: #{tpu_custom_call.1} parent=1 // pred_check
      _
    $region19: #{tpu_custom_call.1} parent=1 // pred_check_branch
      %42 = sbr.rel (0) target = $region21
    $region20: #{tpu_custom_call.1} parent=1 // pred_region
      _
    $region21: #{tpu_custom_call.1} parent=1 // pred_fallthru
      _
    // Predicated region
    $region22: #{tpu_custom_call.1} parent=1 // pred_check
      _
    $region23: #{tpu_custom_call.1} parent=1 // pred_check_branch
      %44 = sbr.rel (0) target = $region25
    $region24: #{tpu_custom_call.1} parent=1 // pred_region
      _
    $region25: #{tpu_custom_call.1} parent=1 // pred_fallthru
      _
    %45 = vsyncpa [#allocation4], 1

</llo_original>
